<compile_context>
chip_gen: v5e
topology: v5e:2x2
jax: 0.10.0
libtpu: 0.0.40
codegen_flags: <defaults>
</compile_context>

<pallas_src>
import jax
import jax.numpy as jnp
import numpy as np
from jax.experimental import pallas as pl
from jax.experimental.pallas import tpu as pltpu

_HIGHEST = jax.lax.Precision.HIGHEST

# row indices inside the packed per-head (9, S) parameter block
_MAJOR_R, _MINOR_R, _INV_VAR, _W_TORUS, _W_WORM, _C_SQ, _E_SQ, _C_X, _C_Y = range(9)
_N_PRM_ROWS = 9


def _vmem_limit(*block_bytes):
    # double-buffered I/O blocks + headroom for in-kernel temporaries, clamped
    # to [16 MiB, 64 MiB] (v5e scoped default is 16 MiB; v7x physical is 64).
    need = 4 * int(sum(int(b) for b in block_bytes)) + (4 << 20)
    return int(min(max(need, 16 << 20), 64 << 20))


# ------------------------------ linear kernel -------------------------------

def _linear_kernel(x_ref, w_ref, b_ref, o_ref):
    # x: (tm, K) f32/bf16, w: (K, N) bf16, b: (1, N) f32 -> o: (tm, N) f32
    o_ref[...] = (
        jnp.dot(x_ref[...].astype(jnp.bfloat16), w_ref[...],
                preferred_element_type=jnp.float32)
        + b_ref[...]
    )


def linear(x, w_t_bf16, b):
    """y = x @ w_t + b   (w_t pre-transposed to (K, N) and cast to bf16)."""
    M, K = x.shape
    N = w_t_bf16.shape[1]
    tile_m = min(M, 256)
    xb = jnp.dtype(x.dtype).itemsize
    vmem = _vmem_limit(tile_m * K * xb, K * N * 2, N * 4, tile_m * N * 4)
    # TODO(synk): at realistic D, tile N (multiples of 128) and K with an f32
    # VMEM accumulator instead of keeping the whole (K, N) weight resident.
    return pl.pallas_call(
        _linear_kernel,
        out_shape=jax.ShapeDtypeStruct((M, N), jnp.float32),
        grid=(pl.cdiv(M, tile_m),),
        in_specs=[
            pl.BlockSpec((tile_m, K), lambda i: (i, 0)),
            pl.BlockSpec((K, N), lambda i: (0, 0)),
            pl.BlockSpec((1, N), lambda i: (0, 0)),
        ],
        out_specs=pl.BlockSpec((tile_m, N), lambda i: (i, 0)),
        compiler_params=pltpu.CompilerParams(
            dimension_semantics=("parallel",), vmem_limit_bytes=vmem),
    )(x, w_t_bf16, b.reshape(1, N))


# --------------------- fused per-head toroidal attention --------------------

def _fused_head_kernel(pts_ref, ce_ref, prm_ref, v_ref, attn_ref, ctx_ref):
    # pts:  (2T, hd) f32   rows [q_mean ; k_mean] for this head
    # ce:   (2S, hd) f32   rows [splat centers ; wormhole exits]
    # prm:  (9, S)   f32   packed per-splat parameters (see _pack_head_params)
    # v:    (T, B*hd) bf16 values, all batches side by side in the lane dim
    # attn: (T, T)   f32   softmax attention (identical for every batch elem)
    # ctx:  (T, B*hd) bf16 attn @ v
    pts = pts_ref[...]
    n_s = prm_ref.shape[1]
    n_t = pts.shape[0] // 2

    major_r = prm_ref[_MAJOR_R:_MAJOR_R + 1, :]          # (1, S)
    minor_r = prm_ref[_MINOR_R:_MINOR_R + 1, :]
    inv_var = prm_ref[_INV_VAR:_INV_VAR + 1, :]
    w_torus = prm_ref[_W_TORUS:_W_TORUS + 1, :]
    w_worm = prm_ref[_W_WORM:_W_WORM + 1, :]
    c_sq = prm_ref[_C_SQ:_C_SQ + 1, :]
    e_sq = prm_ref[_E_SQ:_E_SQ + 1, :]
    c_x = prm_ref[_C_X:_C_X + 1, :]
    c_y = prm_ref[_C_Y:_C_Y + 1, :]

    # ||p - c||^2 and ||p - e||^2 for q and k points with ONE f32 MXU matmul:
    #   ||p - c||^2 = ||p||^2 + ||c||^2 - 2 p.c     (HIGHEST, clamped >= 0)
    cross = jax.lax.dot_general(
        pts, ce_ref[...], (((1,), (1,)), ((), ())),
        precision=_HIGHEST, preferred_element_type=jnp.float32)   # (2T, 2S)
    p_sq = jnp.sum(pts * pts, axis=-1, keepdims=True)             # (2T, 1)
    tot_c_sq = jnp.maximum(p_sq + c_sq - 2.0 * cross[:, :n_s], 0.0)
    tot_e_sq = jnp.maximum(p_sq + e_sq - 2.0 * cross[:, n_s:], 0.0)

    # xy-plane term only contracts 2 coords -> exact VPU broadcasts, no MXU.
    dx = pts[:, 0:1] - c_x                                         # (2T, S)
    dy = pts[:, 1:2] - c_y
    xy_sq = dx * dx + dy * dy
    z_sq = jnp.maximum(tot_c_sq - xy_sq, 0.0)

    # TODO(synk): only the head_dim > 2 branch of compute_torus_distance is
    # implemented (this module config always has head_dim > 2).
    xy_dist = jnp.sqrt(xy_sq + 1e-8)
    major_circle = jnp.abs(xy_dist - major_r)
    minor_dist = jnp.sqrt(major_circle * major_circle + z_sq + 1e-8)
    torus_dist = jnp.abs(minor_dist - minor_r)
    torus_att = jnp.exp(-(torus_dist * torus_dist) * inv_var)
    worm_conn = jnp.exp(-0.5 * (tot_c_sq + tot_e_sq))
    phi = w_torus * torus_att + w_worm * worm_conn                 # (2T, S)

    # logits[i, j] = sum_s phi_q[i, s] * phi_k[j, s]   (bf16 MXU, f32 acc)
    logits = jax.lax.dot_general(
        phi[:n_t].astype(jnp.bfloat16), phi[n_t:].astype(jnp.bfloat16),
        (((1,), (1,)), ((), ())), preferred_element_type=jnp.float32)  # (T, T)
    m = jnp.max(logits, axis=-1, keepdims=True)
    ex = jnp.exp(logits - m)
    inv = pl.reciprocal(jnp.sum(ex, axis=-1, keepdims=True), approx=True)
    attn = ex * inv
    attn_ref[...] = attn

    # ctx = attn @ v : one (T,T)x(T,B*hd) MXU call covering every batch,
    # stored lane-dense and in bf16 (halves the writeback).
    ctx_ref[...] = jnp.dot(
        attn.astype(jnp.bfloat16), v_ref[...],
        preferred_element_type=jnp.float32).astype(jnp.bfloat16)


def fused_toroidal_attention(pts, ce, prm, v_h):
    H, T2, hd = pts.shape
    T = T2 // 2
    S2 = ce.shape[1]
    S = prm.shape[2]
    BH = v_h.shape[2]
    vmem = _vmem_limit(T2 * hd * 4, S2 * hd * 4, _N_PRM_ROWS * S * 4,
                       T * BH * 2, T * T * 4, T * BH * 2,
                       T2 * S2 * 4, 8 * T2 * S * 4, 3 * T * T * 4)
    # TODO(synk): at large T add a query-tile grid axis (grid=(H, T//tq)) with
    # online softmax over key tiles so the (T, T) block never exceeds VMEM and
    # both v7x TensorCores stay busy even when H is small or odd.
    return pl.pallas_call(
        _fused_head_kernel,
        out_shape=(
            jax.ShapeDtypeStruct((H, T, T), jnp.float32),
            jax.ShapeDtypeStruct((H, T, BH), jnp.bfloat16),
        ),
        grid=(H,),
        in_specs=[
            pl.BlockSpec((None, T2, hd), lambda h: (h, 0, 0)),
            pl.BlockSpec((None, S2, hd), lambda h: (h, 0, 0)),
            pl.BlockSpec((None, _N_PRM_ROWS, S), lambda h: (h, 0, 0)),
            pl.BlockSpec((None, T, BH), lambda h: (h, 0, 0)),
        ],
        out_specs=(
            pl.BlockSpec((None, T, T), lambda h: (h, 0, 0)),
            pl.BlockSpec((None, T, BH), lambda h: (h, 0, 0)),
        ),
        compiler_params=pltpu.CompilerParams(
            dimension_semantics=("parallel",), vmem_limit_bytes=vmem),
    )(pts, ce, prm, v_h)


def _pack_head_params(centers, exits, scalars):
    """Parameter-only per-splat constants, computed once outside the kernel."""
    major_r = jnp.abs(scalars[:, 0])                      # (H, S)
    minor_r = jnp.abs(scalars[:, 1])
    worm_gate = jax.nn.sigmoid(scalars[:, 2])
    amp = jax.nn.sigmoid(scalars[:, 3])
    torus_w = jax.nn.sigmoid(scalars[:, 4])
    worm_w = jax.nn.sigmoid(scalars[:, 5])
    rows = [None] * _N_PRM_ROWS
    rows[_MAJOR_R] = major_r
    rows[_MINOR_R] = minor_r
    rows[_INV_VAR] = 1.0 / (2.0 * minor_r * minor_r + 1e-8)
    rows[_W_TORUS] = amp * torus_w
    rows[_W_WORM] = amp * worm_w * worm_gate
    rows[_C_SQ] = jnp.sum(centers * centers, axis=-1)
    rows[_E_SQ] = jnp.sum(exits * exits, axis=-1)
    rows[_C_X] = centers[:, :, 0]
    rows[_C_Y] = centers[:, :, 1]
    return jnp.stack(rows, axis=1).astype(jnp.float32)    # (H, 9, S)


# ------------------------------ forward glue --------------------------------

def toroidal_attention_forward(x, params, n_heads, n_splats):
    B, T, D = x.shape
    H = n_heads
    hd = D // H

    qkv_w_t = params["qkv_w"].T.astype(jnp.bfloat16)      # (D, 3D) bf16
    out_w_t = params["out_w"].T.astype(jnp.bfloat16)      # (D, D)  bf16

    qkv = linear(x.reshape(B * T, D), qkv_w_t, params["qkv_b"])
    qkv = qkv.reshape(B, T, 3, H, hd)
    q, k, v = qkv[:, :, 0], qkv[:, :, 1], qkv[:, :, 2]    # (B, T, H, hd)

    # Batch-mean q / k points, stacked into (H, 2T, hd) so phi_q and phi_k
    # come out of ONE set of in-kernel matmuls (tiny tensors here).
    q_mean = jnp.transpose(jnp.mean(q, axis=0), (1, 0, 2))   # (H, T, hd)
    k_mean = jnp.transpose(jnp.mean(k, axis=0), (1, 0, 2))
    pts = jnp.concatenate([q_mean, k_mean], axis=1)          # (H, 2T, hd)

    # Values per head, all batches side by side in the lane dim, bf16.
    # TODO(synk): at realistic sizes emit this layout (and q/k head-major)
    # directly from the qkv linear's out_specs instead of wrapper transposes.
    v_h = jnp.transpose(v, (2, 1, 0, 3)).reshape(H, T, B * hd)
    v_h = v_h.astype(jnp.bfloat16)

    ce = jnp.concatenate([params["centers"], params["exits"]], axis=1)  # (H,2S,hd)
    prm = _pack_head_params(params["centers"], params["exits"],
                            params["scalars"])                          # (H,9,S)

    attn, ctx = fused_toroidal_attention(pts, ce, prm, v_h)
    # attn: (H, T, T) f32   ctx: (H, T, B*hd) bf16

    ctx = jnp.transpose(ctx.reshape(H, T, B, hd), (2, 1, 0, 3)).reshape(B * T, D)
    out = linear(ctx, out_w_t, params["out_b"]).reshape(B, T, D)

    # The PyTorch module returns (B, T, T, H); the weights are identical for
    # every batch element, so the kernel emits (H, T, T) once and the B-fold
    # copy is only a lazy broadcast at the module boundary.
    attention_weights = jnp.broadcast_to(
        jnp.transpose(attn, (1, 2, 0))[None], (B, T, T, H))
    return out, attention_weights


# ----------------------- pure-JAX reference (for check) ---------------------

def reference_forward(x, params, n_heads, n_splats):
    B, T, D = x.shape
    H, hd = n_heads, D // n_heads
    hi = _HIGHEST

    qkv = jnp.einsum("bti,oi->bto", x, params["qkv_w"], precision=hi)
    qkv = (qkv + params["qkv_b"]).reshape(B, T, 3, H, hd)
    q, k, v = qkv[:, :, 0], qkv[:, :, 1], qkv[:, :, 2]
    q_mean = jnp.mean(q, axis=0)                              # (T, H, hd)
    k_mean = jnp.mean(k, axis=0)

    def splat_eval(pts, C, E, scal):
        rel = pts[:, None, :] - C[None]                       # (T, S, hd)
        xy_sq = rel[..., 0] ** 2 + rel[..., 1] ** 2
        z = jnp.linalg.norm(rel[..., 2:], axis=-1)
        xy_dist = jnp.sqrt(xy_sq + 1e-8)
        major_circle = jnp.abs(xy_dist - jnp.abs(scal[0]))
        minor_dist = jnp.sqrt(major_circle ** 2 + z ** 2 + 1e-8)
        torus_dist = jnp.abs(minor_dist - jnp.abs(scal[1]))
        torus_att = jnp.exp(-torus_dist ** 2 / (2 * jnp.abs(scal[1]) ** 2 + 1e-8))
        cd = jnp.linalg.norm(rel, axis=-1)
        wd = jnp.linalg.norm(pts[:, None, :] - E[None], axis=-1)
        worm = (jnp.exp(-0.5 * cd ** 2) * jnp.exp(-0.5 * wd ** 2)
                * jax.nn.sigmoid(scal[2]))
        comb = jax.nn.sigmoid(scal[4]) * torus_att + jax.nn.sigmoid(scal[5]) * worm
        return jax.nn.sigmoid(scal[3]) * comb                 # (T, S)

    phi_q = jnp.stack([
        splat_eval(q_mean[:, h], params["centers"][h], params["exits"][h],
                   params["scalars"][h]) for h in range(H)])
    phi_k = jnp.stack([
        splat_eval(k_mean[:, h], params["centers"][h], params["exits"][h],
                   params["scalars"][h]) for h in range(H)])
    logits = jnp.einsum("his,hjs->hij", phi_q, phi_k, precision=hi)
    attn = jax.nn.softmax(logits, axis=-1)
    attn_b = jnp.broadcast_to(jnp.transpose(attn, (1, 2, 0))[None], (B, T, T, H))
    out = jnp.einsum("btsh,bshd->bthd", attn_b, v, precision=hi).reshape(B, T, D)
    out = jnp.einsum("bti,oi->bto", out, params["out_w"], precision=hi)
    out = out + params["out_b"]
    return out, attn_b


# ---------------------------------- main -------------------------------------

if __name__ == "__main__":
    B, T, D = 2, 8, 32          # batch, seq, embedding_dim
    H, S = 4, 8                 # n_heads, n_splats (small for this demo)
    hd = D // H

    key = jax.random.PRNGKey(0)
    ks = jax.random.split(key, 7)
    x = jax.random.normal(ks[0], (B, T, D), jnp.float32)

    # ToroidalSplat.__init__ constants: [major_r, minor_r, wormhole_strength,
    # amplitude, torus_weight, wormhole_weight]
    base_scal = jnp.array([1.0, 0.5, 0.5, 1.0, 0.7, 0.3], jnp.float32)
    params = dict(
        centers=jax.random.normal(ks[1], (H, S, hd), jnp.float32),
        exits=jax.random.normal(ks[2], (H, S, hd), jnp.float32),
        scalars=jnp.broadcast_to(base_scal[None, :, None], (H, 6, S)).astype(
            jnp.float32),
        qkv_w=jax.random.normal(ks[3], (3 * D, D), jnp.float32) / jnp.sqrt(D),
        qkv_b=jax.random.normal(ks[4], (3 * D,), jnp.float32) * 0.02,
        out_w=jax.random.normal(ks[5], (D, D), jnp.float32) / jnp.sqrt(D),
        out_b=jax.random.normal(ks[6], (D,), jnp.float32) * 0.02,
    )

    out, attn_w = toroidal_attention_forward(x, params, H, S)
    jax.block_until_ready((out, attn_w))

    ref_out, ref_attn = reference_forward(x, params, H, S)
    assert out.shape == (B, T, D) and attn_w.shape == (B, T, T, H)
    # Projection / logits / attn@v matmuls deliberately use bf16 operands with
    # f32 accumulation (and approx reciprocal in the softmax), so compare
    # against the f32 reference at bf16-level tolerance.
    np.testing.assert_allclose(np.asarray(out), np.asarray(ref_out),
                               atol=2e-2, rtol=2e-2)
    np.testing.assert_allclose(np.asarray(attn_w), np.asarray(ref_attn),
                               atol=2e-2, rtol=2e-2)
    print("KERNEL_OK")
</pallas_src>

<mosaic_0001>
module attributes {stable_mosaic.version = 11 : i64} {
  func.func @_linear_kernel(%arg0: i32, %arg1: memref<16x32xf32, #tpu.memory_space<vmem>>, %arg2: memref<32x96xbf16, #tpu.memory_space<vmem>>, %arg3: memref<1x96xf32, #tpu.memory_space<vmem>>, %arg4: memref<16x96xf32, #tpu.memory_space<vmem>>) attributes {dimension_semantics = [#tpu.dimension_semantics<parallel>], iteration_bounds = array<i64: 1>, scalar_prefetch = 0 : i64, scratch_operands = 0 : i64, tpu.core_type = #tpu.core_type<tc>, window_params = [{transform_indices = @transform_0, window_bounds = array<i64: 16, 32>}, {pipeline_mode = #tpu.pipeline_mode<synchronous>, transform_indices = @transform_1, window_bounds = array<i64: 32, 96>}, {pipeline_mode = #tpu.pipeline_mode<synchronous>, transform_indices = @transform_2, window_bounds = array<i64: 1, 96>}, {transform_indices = @transform_3, window_bounds = array<i64: 16, 96>}]} {
    %c0 = arith.constant 0 : index
    %c0_0 = arith.constant 0 : index
    %0 = vector.load %arg1[%c0, %c0_0] : memref<16x32xf32, #tpu.memory_space<vmem>>, vector<16x32xf32>
    %1 = arith.truncf %0 : vector<16x32xf32> to vector<16x32xbf16>
    %c0_1 = arith.constant 0 : index
    %c0_2 = arith.constant 0 : index
    %2 = vector.load %arg2[%c0_1, %c0_2] : memref<32x96xbf16, #tpu.memory_space<vmem>>, vector<32x96xbf16>
    %cst = arith.constant dense<0.000000e+00> : vector<16x96xf32>
    %3 = tpu.matmul %1, %2, %cst {dimension_numbers = #tpu.dot_dimension_numbers<[1], [0], [0], [1], [0, 0, 1, 1], [], []>} : vector<16x32xbf16>, vector<32x96xbf16>, vector<16x96xf32> -> vector<16x96xf32>
    %c0_3 = arith.constant 0 : index
    %c0_4 = arith.constant 0 : index
    %4 = vector.load %arg3[%c0_3, %c0_4] : memref<1x96xf32, #tpu.memory_space<vmem>>, vector<1x96xf32>
    %5 = vector.broadcast %4 : vector<1x96xf32> to vector<16x96xf32>
    %6 = arith.addf %3, %5 : vector<16x96xf32>
    %c0_5 = arith.constant 0 : index
    %c0_6 = arith.constant 0 : index
    %7 = vector.load %arg4[%c0_5, %c0_6] : memref<16x96xf32, #tpu.memory_space<vmem>>, vector<16x96xf32>
    tpu.vector_store %arg4[%c0_5, %c0_6], %6 {strides = array<i32>} : memref<16x96xf32, #tpu.memory_space<vmem>>, vector<16x96xf32>,
    return
  }
  func.func @transform_0(%arg0: i32) -> (i32, i32) {
    %c0_i32 = arith.constant 0 : i32
    %c0_i32_0 = arith.constant 0 : i32
    return %arg0, %c0_i32 : i32, i32
  }
  func.func @transform_1(%arg0: i32) -> (i32, i32) {
    %c0_i32 = arith.constant 0 : i32
    %c0_i32_0 = arith.constant 0 : i32
    %c0_i32_1 = arith.constant 0 : i32
    return %c0_i32, %c0_i32_0 : i32, i32
  }
  func.func @transform_2(%arg0: i32) -> (i32, i32) {
    %c0_i32 = arith.constant 0 : i32
    %c0_i32_0 = arith.constant 0 : i32
    %c0_i32_1 = arith.constant 0 : i32
    return %c0_i32, %c0_i32_0 : i32, i32
  }
  func.func @transform_3(%arg0: i32) -> (i32, i32) {
    %c0_i32 = arith.constant 0 : i32
    %c0_i32_0 = arith.constant 0 : i32
    return %arg0, %c0_i32 : i32, i32
  }
}

</mosaic_0001>

<llo_original>
// kernel: tpu_custom_call.1
$region0: #{tpu_custom_call.1}
  #allocation0 [shape = 'u32[]', space=smem, size = 0x4, offset = 0x4, fixed_abs, tag = 'smem constant byte address 0x4 - core index']
  #allocation1 [shape = 'u32[72,128]{1,0:T(1,128)}', space=vmem, size = 0x9000, scoped, tag = 'internal scratch']
  %s0 = inlined_call_operand.hbm [shape: f32[16,32], index: 0, kind: input, shape index: {}]
  %s1 = inlined_call_operand.hbm [shape: bf16[32,96], index: 1, kind: input, shape index: {}]
  %s2 = inlined_call_operand.vmem [shape: f32[1,96], index: 2, kind: input, shape index: {}]
  %s3 = inlined_call_operand.hbm [shape: f32[16,96], index: 3, kind: output, shape index: {}]
  %s4 = sld [smem:[#allocation0]]
  $region30: #{tpu_custom_call.1} parent=0
    _
  %s6 = ssub.s32 1, %s4
  %s7 = scalar_select 0, %s6, %s4
  $region1: #{tpu_custom_call.1} parent=0
    #allocation2 [shape = 'u8[8192]{0}', space=vmem, size = 0x2000, scoped, tag = 'input window, operand 0, single buffered']
    #allocation3 [shape = 's32[1]{0}', space=sflag, size = 0x4, scoped, tag = 'scoped memory for tpu_custom_call.1']
    #allocation4 [shape = 's32[1]{0}', space=sflag, size = 0x4, scoped, tag = 'scoped memory for tpu_custom_call.1']
    #allocation5 [shape = 'u8[8192]{0}', space=vmem, size = 0x2000, scoped, tag = 'input window, operand 1, single buffered']
    #allocation6 [shape = 's32[1]{0}', space=sflag, size = 0x4, scoped, tag = 'scoped memory for tpu_custom_call.1']
    #allocation7 [shape = 'u8[8192]{0}', space=vmem, size = 0x2000, scoped, tag = 'output window, operand 0, single buffered']
    %8 = vsyncpa [#allocation3], 0
    %9 = vsyncpa [#allocation6], 0
    %10 = vsyncpa [#allocation4], 0
    // Predicated region
    $region2: #{tpu_custom_call.1} parent=1 // pred_check
      _
    $region3: #{tpu_custom_call.1} parent=1 // pred_check_branch
      %12 = sbr.rel (0) target = $region5
    $region4: #{tpu_custom_call.1} parent=1 // pred_region
      %14 = vsyncadd [#allocation3], 0
      %s15 = sshll.u32 %s0, 4
      %s16 = int_to_ptr.hbm [resolvable:$true] %s15
      %s17 = sshll.u32 [#allocation2], 4
      %s18 = int_to_ptr.vmem [resolvable:$true] %s17
      %23 = dma.hbm_to_vmem [thread:$0]  %s16, 256, %s18, [#allocation3], 128, 128, 8
    $region5: #{tpu_custom_call.1} parent=1 // pred_fallthru
      _
    // Predicated region
    $region6: #{tpu_custom_call.1} parent=1 // pred_check
      _
    $region7: #{tpu_custom_call.1} parent=1 // pred_check_branch
      %25 = sbr.rel (0) target = $region9
    $region8: #{tpu_custom_call.1} parent=1 // pred_region
      %27 = vsyncadd [#allocation6], 0
      %s28 = sshll.u32 %s1, 4
      %s29 = int_to_ptr.hbm [resolvable:$true] %s28
      %s30 = sshll.u32 [#allocation5], 4
      %s31 = int_to_ptr.vmem [resolvable:$true] %s30
      %36 = dma.hbm_to_vmem [thread:$0]  %s29, 256, %s31, [#allocation6], 64, 64, 4
    $region9: #{tpu_custom_call.1} parent=1 // pred_fallthru
      _
    // Predicated region
    $region10: #{tpu_custom_call.1} parent=1 // pred_check
      _
    $region11: #{tpu_custom_call.1} parent=1 // pred_check_branch
      %38 = sbr.rel (0) target = $region13
    $region12: #{tpu_custom_call.1} parent=1 // pred_region
      _
    $region13: #{tpu_custom_call.1} parent=1 // pred_fallthru
      _
    // Predicated region
    $region14: #{tpu_custom_call.1} parent=1 // pred_check
      _
    $region15: #{tpu_custom_call.1} parent=1 // pred_check_branch
      %40 = sbr.rel (0) target = $region17
    $region16: #{tpu_custom_call.1} parent=1 // pred_region
      %42 = dma.done [#allocation3], 256
    $region17: #{tpu_custom_call.1} parent=1 // pred_fallthru
      _
    // Predicated region
    $region18: #{tpu_custom_call.1} parent=1 // pred_check
      _
    $region19: #{tpu_custom_call.1} parent=1 // pred_check_branch
      %44 = sbr.rel (0) target = $region21
    $region20: #{tpu_custom_call.1} parent=1 // pred_region
      %46 = dma.done [#allocation6], 256
    $region21: #{tpu_custom_call.1} parent=1 // pred_fallthru
      _
    %v48 = vld [vmem:[#allocation2] sm:$0xff]
    %v49 = vld [vmem:[#allocation2 + $0x8] sm:$0xff]
    %v50 = vpack.c.bf16 %v49, %v48
    %v51 = vld [vmem:[#allocation5] sm:$0xf]
    %v52 = vld [vmem:[#allocation5 + $0x4] sm:$0xf]
    %v53 = vld [vmem:[#allocation5 + $0x8] sm:$0xf]
    %v54 = vld [vmem:[#allocation5 + $0xc] sm:$0xf]
    %v55 = vld [vmem:[%s2] sm:$0x1]
    %v57 = vperm.slane %v55, 0
    %v63 = vunpack.c.l.b16 %v51
    %v64 = vunpack.c.l.b16 %v52
    %v65 = vunpack.c.l.b16 %v53
    %v66 = vunpack.c.l.b16 %v54
    %v67 = vpack.c.b16 %v64, %v63
    %v68 = vpack.c.b16 %v66, %v65
    %vm71 = vcmask 261120
    %v73 = vsel %vm71, %v50, 0
    %75 = vmatpush.bf16.msra.mxu0 0
    %76 = vmatpush.bf16.msra.mxu0 0
    %77 = vmatpush.bf16.msra.mxu0 0
    %78 = vmatpush.bf16.msra.mxu0 0
    %79 = vmatpush.bf16.msra.mxu0 0
    %80 = vmatpush.bf16.msra.mxu0 0
    %81 = vmatpush.bf16.msra.mxu0 %v68
    %82 = vmatpush.bf16.msra.mxu0 %v67
    %83 = vmatmul.bf16.gmra.mxu0 %v73
    %v84 = vpop.f32.mrf.mxu0
    %v85 = vadd.f32 %v57, %v84
    %v86 = vpop.f32.mrf.mxu0
    %v87 = vadd.f32 %v57, %v86
    %88 = vdwg.mxu0
    %vm89 = vcmask 785408
    %90 = vst.msk [vmem:[#allocation7] sm:$0xff] %vm89, %v85
    %91 = vst.msk [vmem:[#allocation7 + $0x8] sm:$0xff] %vm89, %v87
    // Predicated region
    $region22: #{tpu_custom_call.1} parent=1 // pred_check
      _
    $region23: #{tpu_custom_call.1} parent=1 // pred_check_branch
      %93 = sbr.rel (0) target = $region25
    $region24: #{tpu_custom_call.1} parent=1 // pred_region
      %95 = vsyncadd [#allocation4], 0
      %s96 = sshll.u32 [#allocation7], 4
      %s97 = int_to_ptr.vmem [resolvable:$true] %s96
      %s98 = sshll.u32 %s3, 4
      %s99 = int_to_ptr.hbm [resolvable:$true] %s98
      %104 = dma.vmem_to_hbm [thread:$0]  %s97, 256, %s99, [#allocation4], 128, 128, 8
    $region25: #{tpu_custom_call.1} parent=1 // pred_fallthru
      _
    // Predicated region
    $region26: #{tpu_custom_call.1} parent=1 // pred_check
      _
    $region27: #{tpu_custom_call.1} parent=1 // pred_check_branch
      %106 = sbr.rel (0) target = $region29
    $region28: #{tpu_custom_call.1} parent=1 // pred_region
      %108 = dma.done [#allocation4], 256
    $region29: #{tpu_custom_call.1} parent=1 // pred_fallthru
      _
    %109 = vsyncpa [#allocation3], 1
    %110 = vsyncpa [#allocation6], 1
    %111 = vsyncpa [#allocation4], 1

</llo_original>
